<compile_context>
chip_gen: v6e
topology: v6e:2x2x1
jax: 0.10.0
libtpu: 0.0.40
codegen_flags: <defaults>
</compile_context>

<pallas_src>
import functools

import jax
import jax.numpy as jnp
from jax import lax
from jax.experimental import pallas as pl
from jax.experimental.pallas import tpu as pltpu


def _round_up(a, b):
    return (a + b - 1) // b * b


def _guide_kernel(x_ref, w1_ref, t1_ref, w2_ref, b2_ref, o_ref, *, chunk, unroll):
    """Fused pointwise NN over one pixel tile (channels on sublanes, pixels on lanes).

    x_ref : (C, TILE_P)  input pixel tile
    w1_ref: (G, C)       conv1 weight with BN scale pre-folded
    t1_ref: (G, 1)       folded conv1 bias + BN shift
    w2_ref: (G, 1)       conv2 weight as a column
    b2_ref: (1,)         conv2 bias (SMEM scalar)
    o_ref : (1, TILE_P)  output tile (lane-dense)
    """
    G = w1_ref.shape[0]
    tile_p = x_ref.shape[-1]
    n_chunks = tile_p // chunk

    # Hoisted once per tile (JAX does not CSE broadcast_in_dim inside the loop).
    w1 = w1_ref[...]                                            # (G, C)
    t1_b = jnp.broadcast_to(t1_ref[...], (G, chunk))            # (G, chunk)
    w2_b = jnp.broadcast_to(w2_ref[...], (G, chunk))            # (G, chunk)
    b2_b = jnp.full((1, chunk), b2_ref[0], jnp.float32)         # (1, chunk)

    def body(i, carry):
        off = pl.multiple_of(i * chunk, chunk)
        # Cast after the block is already in VMEM (free on the VPU; halves HBM
        # bytes if callers ever pass bf16/u8 inputs).
        x = x_ref[:, pl.ds(off, chunk)].astype(jnp.float32)              # (C, chunk)
        # conv1 (1x1) == channel matmul on the MXU; BN scale folded into W1.
        h = jnp.dot(w1, x, preferred_element_type=jnp.float32)           # (G, chunk)
        h = jnp.maximum(h + t1_b, 0.0)                                   # VPU
        # conv2 (1x1, out_ch=1): w2-weighted sublane reduction (VPU mul + XLU
        # reduce) — h is consumed straight from vregs, no VMEM round-trip.
        y = jnp.sum(h * w2_b, axis=0, keepdims=True) + b2_b              # (1, chunk)
        o_ref[:, pl.ds(off, chunk)] = jax.nn.sigmoid(y).astype(o_ref.dtype)
        return carry

    lax.fori_loop(0, n_chunks, body, 0, unroll=unroll)


@functools.partial(jax.jit, static_argnames=("max_tile_p",))
def guide_pointwise_nn(x_nchw, params, max_tile_p=128 * 1024):
    """x_nchw: (N, 3, H, W). Returns (N, H, W) float32."""
    w1, b1, bn_gamma, bn_beta, bn_mean, bn_var, w2, b2 = params
    N, C, H, W = x_nchw.shape
    G = w1.shape[0]
    P = H * W

    # Channel-major, pixels-last: merging trailing H,W of contiguous NCHW is
    # free (no transpose or dtype-cast pass over HBM).
    x = x_nchw.reshape(N, C, P)

    # Pixel tiling: lane-aligned chunks consumed in-vregs; tile_p is a multiple
    # of the chunk size, ragged last blocks handled by Pallas (no jnp.pad).
    chunk = min(512, _round_up(P, 128))
    tile_p = min(_round_up(max_tile_p, chunk), _round_up(P, chunk))
    num_tiles = pl.cdiv(P, tile_p)
    n_chunks = tile_p // chunk
    unroll = min(4, n_chunks)

    # Fold conv1 bias + (eval-mode) BatchNorm into the conv1 weight / a shift:
    #   bn(conv(x)) = conv_nobias(x) * s + t,
    #   s = gamma / sqrt(var + eps),  t = (b1 - mean) * s + beta
    eps = 1e-5
    s1 = bn_gamma / jnp.sqrt(bn_var + eps)                                  # (G,)
    w1s = (w1.reshape(G, C) * s1[:, None]).astype(jnp.float32)              # (G, C)
    t1 = ((b1 - bn_mean) * s1 + bn_beta).reshape(G, 1).astype(jnp.float32)  # (G, 1)
    w2c = w2.reshape(G, 1).astype(jnp.float32)                              # (G, 1)
    b2v = b2.reshape(1).astype(jnp.float32)                                 # (1,) SMEM

    in_itemsize = jnp.dtype(x_nchw.dtype).itemsize
    cost = pl.CostEstimate(
        flops=2 * N * P * G * (C + 1),
        transcendentals=N * P,
        bytes_accessed=N * P * C * in_itemsize + 4 * N * P + 4 * G * (C + 2) + 4,
    )

    out = pl.pallas_call(
        functools.partial(_guide_kernel, chunk=chunk, unroll=unroll),
        out_shape=jax.ShapeDtypeStruct((N, 1, P), jnp.float32),
        grid_spec=pltpu.PrefetchScalarGridSpec(
            num_scalar_prefetch=0,
            grid=(N, num_tiles),
            in_specs=[
                pl.BlockSpec((pl.Squeezed(), C, tile_p), lambda n, p: (n, 0, p)),  # x
                pl.BlockSpec((G, C), lambda n, p: (0, 0)),                          # W1 (scaled)
                pl.BlockSpec((G, 1), lambda n, p: (0, 0)),                          # t1
                pl.BlockSpec((G, 1), lambda n, p: (0, 0)),                          # W2 column
                pl.BlockSpec(memory_space=pltpu.MemorySpace.SMEM),                  # b2 scalar
            ],
            out_specs=pl.BlockSpec((pl.Squeezed(), 1, tile_p), lambda n, p: (n, 0, p)),
        ),
        compiler_params=pltpu.CompilerParams(
            dimension_semantics=("parallel", "parallel"),
            vmem_limit_bytes=48 * 1024 * 1024,
        ),
        cost_estimate=cost,
    )(x, w1s, t1, w2c, b2v)

    return out[:, 0, :].reshape(N, H, W)   # .squeeze(1)


def init_params(key, guide_complexity=16, bn=False):
    """Deterministic parameter init matching the module's shapes."""
    G = guide_complexity
    k1, k2, k3, k4 = jax.random.split(key, 4)
    w1 = jax.random.normal(k1, (G, 3, 1, 1), jnp.float32) * 0.1   # conv1.weight
    b1 = jax.random.normal(k2, (G,), jnp.float32) * 0.1           # conv1.bias
    if bn:
        bn_gamma = jnp.ones((G,), jnp.float32)
        bn_beta = jnp.zeros((G,), jnp.float32)
        bn_mean = jnp.zeros((G,), jnp.float32)
        bn_var = jnp.ones((G,), jnp.float32)
    else:
        # identity affine == "no batch norm" (var chosen so eps cancels exactly)
        bn_gamma = jnp.ones((G,), jnp.float32)
        bn_beta = jnp.zeros((G,), jnp.float32)
        bn_mean = jnp.zeros((G,), jnp.float32)
        bn_var = jnp.ones((G,), jnp.float32) - 1e-5
    w2 = jax.random.normal(k3, (1, G, 1, 1), jnp.float32) * 0.1   # conv2.weight
    b2 = jax.random.normal(k4, (1,), jnp.float32) * 0.1           # conv2.bias
    return (w1, b1, bn_gamma, bn_beta, bn_mean, bn_var, w2, b2)


def reference_forward(x_nchw, params):
    """Pure-JAX reference of the PyTorch forward (for verification)."""
    w1, b1, bn_gamma, bn_beta, bn_mean, bn_var, w2, b2 = params
    eps = 1e-5
    h = jnp.einsum("nchw,oc->nohw", x_nchw, w1.reshape(w1.shape[0], 3))
    h = h + b1[None, :, None, None]
    h = (h - bn_mean[None, :, None, None]) / jnp.sqrt(bn_var + eps)[None, :, None, None]
    h = h * bn_gamma[None, :, None, None] + bn_beta[None, :, None, None]
    h = jnp.maximum(h, 0.0)
    y = jnp.einsum("nghw,og->nohw", h, w2.reshape(1, w2.shape[1]))
    y = y + b2[None, :, None, None]
    y = jax.nn.sigmoid(y)
    return y[:, 0]  # squeeze(1)


if __name__ == "__main__":
    key = jax.random.PRNGKey(0)
    kx, kp = jax.random.split(key)

    N, C, H, W = 2, 3, 16, 16          # conv1 requires in_channels=3
    guide_complexity = 16
    x = jax.random.normal(kx, (N, C, H, W), jnp.float32)

    params = init_params(kp, guide_complexity=guide_complexity, bn=False)

    out = guide_pointwise_nn(x, params)
    out = jax.block_until_ready(out)

    ref = reference_forward(x, params)
    assert out.shape == (N, H, W), out.shape
    assert jnp.allclose(out, ref, atol=1e-5, rtol=1e-5), float(jnp.max(jnp.abs(out - ref)))

    print("KERNEL_OK")
</pallas_src>

<mosaic_0001>
module attributes {stable_mosaic.version = 11 : i64} {
  func.func @_guide_kernel(%arg0: i32, %arg1: i32, %arg2: memref<1x3x256xf32, #tpu.memory_space<vmem>>, %arg3: memref<16x3xf32, #tpu.memory_space<vmem>>, %arg4: memref<16x1xf32, #tpu.memory_space<vmem>>, %arg5: memref<16x1xf32, #tpu.memory_space<vmem>>, %arg6: memref<1xf32, #tpu.memory_space<smem>>, %arg7: memref<1x1x256xf32, #tpu.memory_space<vmem>>) attributes {dimension_semantics = [#tpu.dimension_semantics<parallel>, #tpu.dimension_semantics<parallel>], iteration_bounds = array<i64: 2, 1>, scalar_prefetch = 0 : i64, scratch_operands = 0 : i64, tpu.core_type = #tpu.core_type<tc>, window_params = [{transform_indices = @transform_0, window_bounds = array<i64: 1, 3, 256>}, {pipeline_mode = #tpu.pipeline_mode<synchronous>, transform_indices = @transform_1, window_bounds = array<i64: 16, 3>}, {pipeline_mode = #tpu.pipeline_mode<synchronous>, transform_indices = @transform_2, window_bounds = array<i64: 16, 1>}, {pipeline_mode = #tpu.pipeline_mode<synchronous>, transform_indices = @transform_3, window_bounds = array<i64: 16, 1>}, {transform_indices = @transform_4, window_bounds = array<i64: 1>}, {transform_indices = @transform_5, window_bounds = array<i64: 1, 1, 256>}]} {
    %c0 = arith.constant 0 : index
    %c0_0 = arith.constant 0 : index
    %0 = vector.load %arg3[%c0, %c0_0] : memref<16x3xf32, #tpu.memory_space<vmem>>, vector<16x3xf32>
    %c0_1 = arith.constant 0 : index
    %c0_2 = arith.constant 0 : index
    %1 = vector.load %arg4[%c0_1, %c0_2] : memref<16x1xf32, #tpu.memory_space<vmem>>, vector<16x1xf32>
    %2 = vector.shape_cast %1 : vector<16x1xf32> to vector<16x1xf32>
    %3 = vector.broadcast %2 : vector<16x1xf32> to vector<16x256xf32>
    %c0_3 = arith.constant 0 : index
    %c0_4 = arith.constant 0 : index
    %4 = vector.load %arg5[%c0_3, %c0_4] : memref<16x1xf32, #tpu.memory_space<vmem>>, vector<16x1xf32>
    %5 = vector.shape_cast %4 : vector<16x1xf32> to vector<16x1xf32>
    %6 = vector.broadcast %5 : vector<16x1xf32> to vector<16x256xf32>
    %c0_5 = arith.constant 0 : index
    %7 = memref.load %arg6[%c0_5] : memref<1xf32, #tpu.memory_space<smem>>
    %8 = vector.broadcast %7 : f32 to vector<1x256xf32>
    %c0_i32 = arith.constant 0 : i32
    %c256_i32 = arith.constant 256 : i32
    %9 = arith.muli %c0_i32, %c256_i32 : i32
    %10 = tpu.assume_multiple %9, 256 : i32
    %c0_6 = arith.constant 0 : index
    %c0_7 = arith.constant 0 : index
    %11 = arith.index_cast %10 : i32 to index
    %12 = vector.load %arg2[%c0_6, %c0_7, %11] : memref<1x3x256xf32, #tpu.memory_space<vmem>>, vector<1x3x256xf32>
    %13 = vector.shape_cast %12 : vector<1x3x256xf32> to vector<3x256xf32>
    %cst = arith.constant dense<0.000000e+00> : vector<16x256xf32>
    %14 = tpu.matmul %0, %13, %cst {dimension_numbers = #tpu.dot_dimension_numbers<[1], [0], [0], [1], [0, 0, 1, 1], [], []>} : vector<16x3xf32>, vector<3x256xf32>, vector<16x256xf32> -> vector<16x256xf32>
    %15 = arith.addf %14, %3 : vector<16x256xf32>
    %cst_8 = arith.constant 0.000000e+00 : f32
    %16 = vector.broadcast %cst_8 : f32 to vector<16x256xf32>
    %17 = arith.maximumf %15, %16 : vector<16x256xf32>
    %18 = arith.mulf %17, %6 : vector<16x256xf32>
    %cst_9 = arith.constant dense<0.000000e+00> : vector<256xf32>
    %19 = vector.multi_reduction <add>, %18, %cst_9 [0] : vector<16x256xf32> to vector<256xf32>
    %20 = vector.shape_cast %19 : vector<256xf32> to vector<1x256xf32>
    %21 = arith.addf %20, %8 : vector<1x256xf32>
    %22 = arith.negf %21 : vector<1x256xf32>
    %23 = math.exp %22 : vector<1x256xf32>
    %cst_10 = arith.constant 1.000000e+00 : f32
    %24 = vector.broadcast %cst_10 : f32 to vector<1x256xf32>
    %25 = arith.addf %24, %23 : vector<1x256xf32>
    %26 = arith.divf %24, %25 : vector<1x256xf32>
    %c0_11 = arith.constant 0 : index
    %c0_12 = arith.constant 0 : index
    %27 = arith.index_cast %10 : i32 to index
    %28 = vector.load %arg7[%c0_11, %c0_12, %27] : memref<1x1x256xf32, #tpu.memory_space<vmem>>, vector<1x1x256xf32>
    %29 = vector.shape_cast %28 : vector<1x1x256xf32> to vector<1x256xf32>
    %30 = vector.shape_cast %26 : vector<1x256xf32> to vector<1x1x256xf32>
    tpu.vector_store %arg7[%c0_11, %c0_12, %27], %30 {strides = array<i32>} : memref<1x1x256xf32, #tpu.memory_space<vmem>>, vector<1x1x256xf32>,
    %c1_i32 = arith.constant 1 : i32
    return
  }
  func.func @transform_0(%arg0: i32, %arg1: i32) -> (i32, i32, i32) {
    %c0_i32 = arith.constant 0 : i32
    %c0_i32_0 = arith.constant 0 : i32
    return %arg0, %c0_i32, %arg1 : i32, i32, i32
  }
  func.func @transform_1(%arg0: i32, %arg1: i32) -> (i32, i32) {
    %c0_i32 = arith.constant 0 : i32
    %c0_i32_0 = arith.constant 0 : i32
    %c0_i32_1 = arith.constant 0 : i32
    return %c0_i32, %c0_i32_0 : i32, i32
  }
  func.func @transform_2(%arg0: i32, %arg1: i32) -> (i32, i32) {
    %c0_i32 = arith.constant 0 : i32
    %c0_i32_0 = arith.constant 0 : i32
    %c0_i32_1 = arith.constant 0 : i32
    return %c0_i32, %c0_i32_0 : i32, i32
  }
  func.func @transform_3(%arg0: i32, %arg1: i32) -> (i32, i32) {
    %c0_i32 = arith.constant 0 : i32
    %c0_i32_0 = arith.constant 0 : i32
    %c0_i32_1 = arith.constant 0 : i32
    return %c0_i32, %c0_i32_0 : i32, i32
  }
  func.func @transform_4(%arg0: i32, %arg1: i32) -> i32 {
    %c0_i32 = arith.constant 0 : i32
    %c0_i32_0 = arith.constant 0 : i32
    return %c0_i32 : i32
  }
  func.func @transform_5(%arg0: i32, %arg1: i32) -> (i32, i32, i32) {
    %c0_i32 = arith.constant 0 : i32
    %c0_i32_0 = arith.constant 0 : i32
    return %arg0, %c0_i32, %arg1 : i32, i32, i32
  }
}

</mosaic_0001>

<llo_original>
// kernel: squeeze.1
$region0: #{squeeze.1}
  %s0 = inlined_call_operand.vmem [shape: f32[2,256], index: 0, kind: input, shape index: {}]
  %s1 = inlined_call_operand.hbm [shape: f32[2,16,16], index: 1, kind: output, shape index: {}]
  $region1: #{squeeze.1} parent=0
    #allocation0 [shape = 'u8[16384]{0}', space=vmem, size = 0x4000, scoped, tag = 'operand span for operand 1']
    #allocation1 [shape = 's32[1]{0}', space=sflag, size = 0x4, scoped, tag = 'scoped memory for squeeze.1']
    #allocation2 [shape = 'u8[8192]{0}', space=vmem, size = 0x2000, scoped, tag = 'scoped mem for input reshape']
    %2 = vsyncpa [#allocation1], 0
    %s4 = sshll.u32 1, 2
    %s5 = ssub.s32 %s4, 1
    %s6 = scalar_lea.vmem %s0, 2
    %v7 = vld [vmem:[%s6] sm:%s5]
    %s8 = scalar_lea.vmem [#allocation2], 8
    %9 = vst [vmem:[%s8] sm:%s5] %v7
    %v10 = vld [vmem:[%s0] sm:%s5]
    %11 = vst [vmem:[#allocation2] sm:%s5] %v10
    %v12 = vld [vmem:[#allocation2] sm:$0x3]
    %vm13 = vcmask 130048
    %14 = vst.msk [vmem:[#allocation0] ss:$16 sm:$0x3] %vm13, %v12
    %s15 = scalar_lea.vmem [#allocation2], 8
    %v16 = vld [vmem:[%s15] sm:$0x3]
    %vm17 = vcmask 130048
    %s18 = scalar_lea.vmem [#allocation0], 8
    %19 = vst.msk [vmem:[%s18] ss:$16 sm:$0x3] %vm17, %v16
    %v20 = vld.sshfl [vmem:[#allocation2] sm:$0xff pattern:$0x99999180]
    %21 = vrot.lane.b32.xlu0 %v20, 112
    %v22 = vpop.permute.xlu0 %21
    %vm23 = vcmask 130048
    %s24 = scalar_lea.vmem [#allocation0], 1
    %25 = vst.msk [vmem:[%s24] ss:$8 sm:$0xf] %vm23, %v22
    %v26 = vld.sshfl [vmem:[#allocation2] sm:$0xff pattern:$0x99999180]
    %27 = vrot.lane.b32.xlu0 %v26, 96
    %v28 = vpop.permute.xlu0 %27
    %vm29 = vcmask 130048
    %s30 = scalar_lea.vmem [#allocation0], 2
    %31 = vst.msk [vmem:[%s30] ss:$8 sm:$0xf] %vm29, %v28
    %v32 = vld.sshfl [vmem:[#allocation2] sm:$0xff pattern:$0x99999180]
    %33 = vrot.lane.b32.xlu0 %v32, 80
    %v34 = vpop.permute.xlu0 %33
    %vm35 = vcmask 130048
    %s36 = scalar_lea.vmem [#allocation0], 3
    %37 = vst.msk [vmem:[%s36] ss:$8 sm:$0xf] %vm35, %v34
    %v38 = vld.sshfl [vmem:[#allocation2] sm:$0xff pattern:$0x99999180]
    %39 = vrot.lane.b32.xlu0 %v38, 64
    %v40 = vpop.permute.xlu0 %39
    %vm41 = vcmask 130048
    %s42 = scalar_lea.vmem [#allocation0], 4
    %43 = vst.msk [vmem:[%s42] ss:$8 sm:$0xf] %vm41, %v40
    %v44 = vld.sshfl [vmem:[#allocation2] sm:$0xff pattern:$0x99999180]
    %45 = vrot.lane.b32.xlu0 %v44, 48
    %v46 = vpop.permute.xlu0 %45
    %vm47 = vcmask 130048
    %s48 = scalar_lea.vmem [#allocation0], 5
    %49 = vst.msk [vmem:[%s48] ss:$8 sm:$0xf] %vm47, %v46
    %v50 = vld.sshfl [vmem:[#allocation2] sm:$0xff pattern:$0x99999180]
    %51 = vrot.lane.b32.xlu0 %v50, 32
    %v52 = vpop.permute.xlu0 %51
    %vm53 = vcmask 130048
    %s54 = scalar_lea.vmem [#allocation0], 6
    %55 = vst.msk [vmem:[%s54] ss:$8 sm:$0xf] %vm53, %v52
    %v56 = vld.sshfl [vmem:[#allocation2] sm:$0xff pattern:$0x99999180]
    %57 = vrot.lane.b32.xlu0 %v56, 16
    %v58 = vpop.permute.xlu0 %57
    %vm59 = vcmask 130048
    %s60 = scalar_lea.vmem [#allocation0], 7
    %61 = vst.msk [vmem:[%s60] ss:$8 sm:$0xf] %vm59, %v58
    %s63 = ssub.s32 512, 512
    %64 = vsyncadd [#allocation1], %s63
    %s66 = sshll.u32 [#allocation0], 4
    %s67 = int_to_ptr.vmem [resolvable:$true] %s66
    %69 = dma.vmem_to_hbm [thread:$0]  %s67, 512, %s1, [#allocation1]
    %70 = dma.done [#allocation1], 512
    %71 = vsyncpa [#allocation1], 1

// kernel: guide_pointwise_nn.1
$region0: #{guide_pointwise_nn.1}
  #allocation0 [shape = 'u32[]', space=smem, size = 0x4, offset = 0x4, fixed_abs, tag = 'smem constant byte address 0x4 - core index']
  #allocation1 [shape = 'u32[144,128]{1,0:T(1,128)}', space=vmem, size = 0x12000, scoped, tag = 'internal scratch']
  #allocation2 [shape = 'f32[1]{0:T(128)S(6)}', space=smem, size = 0x200, scoped, tag = 'scoped memory for guide_pointwise_nn.1']
  %s0 = inlined_call_operand.vmem [shape: f32[2,3,256], index: 0, kind: input, shape index: {}]
  %s1 = inlined_call_operand.vmem [shape: f32[16,3], index: 1, kind: input, shape index: {}]
  %s2 = inlined_call_operand.vmem [shape: f32[16,1], index: 2, kind: input, shape index: {}]
  %s3 = inlined_call_operand.vmem [shape: f32[16,1], index: 3, kind: input, shape index: {}]
  %s4 = inlined_call_operand.<no memory space> [shape: f32[1], index: 4, kind: input, shape index: {}]
  %s5 = inlined_call_operand.vmem [shape: f32[2,1,256], index: 5, kind: output, shape index: {}]
  %s6 = sld [smem:[#allocation0]]
  $region53: #{guide_pointwise_nn.1} parent=0
    _
  %s8 = ssub.s32 1, %s6
  %s9 = scalar_select 0, %s8, %s6
  %10 = sst [smem:[#allocation2]] %s4
  loop: start=0, step=1, limit=4
  $region2: #{guide_pointwise_nn.1} parent=0 // loop_pre_header
    _
  $region3: #{guide_pointwise_nn.1} parent=0 // loop_header
    %s12 = sphi 0, %s16
    %p13 = scmp.ge.s32.totalorder %s12, 4
    %s19 = sphi 0, %s31
    %s20 = sphi 0, %s27
    %s21 = sphi 0, %s19
    %s22 = sphi 0, %s20
    %s23 = sphi 0, %s21
    %s24 = sphi 0, %s22
    %s36 = sphi 0, %s38
    %s39 = sphi 0, %s36
    %s40 = sphi 0, %s39
    %s56 = sphi 0, %s40
    %s60 = sphi 0, %s60
    %s62 = sphi 0, %s60
    %s63 = sphi 0, %s62
    %s77 = sphi 0, %s63
    %s81 = sphi 0, %s81
    %s83 = sphi 0, %s81
    %s84 = sphi 0, %s83
    %s98 = sphi 0, %s84
    %s102 = sphi 0, %s102
    %s104 = sphi 0, %s102
    %s105 = sphi 0, %s104
    %s119 = sphi 0, %s105
    %s123 = sphi 0, %s123
    %s125 = sphi 0, %s123
    %s126 = sphi 0, %s125
    %s140 = sphi 0, %s126
    %s148 = sphi 0, %s150
    %s151 = sphi 0, %s148
    %s152 = sphi 0, %s151
    %s168 = sphi 0, %s152
  $region4: #{guide_pointwise_nn.1} parent=0 // loop_header_branch
    %15 = sbr.rel (%p13) target = $region8
  $region5: #{guide_pointwise_nn.1} parent=0 // loop_body
    %s17 = ssub.s32 %s12, 1
    %s18 = ssub.s32 %s12, 2
    %s25 = sadd.s32 1, %s20
    %p26 = scmp.ge.s32.totalorder %s25, 1
    %s27 = scalar_select %p26, 0, %s25
    %s28 = sadd.s32 1, %s19
    %s29 = scalar_select %p26, %s28, %s19
    %p30 = scmp.ge.s32.totalorder %s29, 2
    %s31 = scalar_select %p30, 0, %s29
    %s32 = ssub.s32 %s19, %s31
    %s33 = ssub.s32 %s20, %s27
    %s34 = sor.u32 %s32, %s33
    %p35 = scmp.eq.s32.totalorder %s34, 0
    %s37 = sadd.s32 %s36, 1
    %s38 = scalar_select %p35, %s36, %s37
    %p41 = pneg %p35
    %p42 = scmp.eq.s32.totalorder %s12, 1
    %p43 = por %p41, %p42
    %p44 = scmp.ne.s32.totalorder %s36, %s39
    %p45 = scmp.eq.s32.totalorder %s12, 0
    %p46 = por %p44, %p45
    %p47 = scmp.ne.s32.totalorder %s36, %s39
    %p48 = scmp.eq.s32.totalorder %s17, 1
    %p49 = por %p47, %p48
    %p50 = scmp.ne.s32.totalorder %s39, %s40
    %p51 = scmp.eq.s32.totalorder %s17, 0
    %p52 = por %p50, %p51
    %p53 = scmp.ne.s32.totalorder %s39, %s40
    %p54 = scmp.eq.s32.totalorder %s18, 1
    %p55 = por %p53, %p54
    %p57 = scmp.ne.s32.totalorder %s40, %s56
    %p58 = scmp.eq.s32.totalorder %s18, 0
    %p59 = por %p57, %p58
    %s61 = sadd.s32 %s60, 1
    %p64 = scmp.eq.s32.totalorder %s12, 1
    %p65 = scmp.ne.s32.totalorder %s60, %s62
    %p66 = scmp.eq.s32.totalorder %s12, 0
    %p67 = por %p65, %p66
    %p68 = scmp.ne.s32.totalorder %s60, %s62
    %p69 = scmp.eq.s32.totalorder %s17, 1
    %p70 = por %p68, %p69
    %p71 = scmp.ne.s32.totalorder %s62, %s63
    %p72 = scmp.eq.s32.totalorder %s17, 0
    %p73 = por %p71, %p72
    %p74 = scmp.ne.s32.totalorder %s62, %s63
    %p75 = scmp.eq.s32.totalorder %s18, 1
    %p76 = por %p74, %p75
    %p78 = scmp.ne.s32.totalorder %s63, %s77
    %p79 = scmp.eq.s32.totalorder %s18, 0
    %p80 = por %p78, %p79
    %s82 = sadd.s32 %s81, 1
    %p85 = scmp.eq.s32.totalorder %s12, 1
    %p86 = scmp.ne.s32.totalorder %s81, %s83
    %p87 = scmp.eq.s32.totalorder %s12, 0
    %p88 = por %p86, %p87
    %p89 = scmp.ne.s32.totalorder %s81, %s83
    %p90 = scmp.eq.s32.totalorder %s17, 1
    %p91 = por %p89, %p90
    %p92 = scmp.ne.s32.totalorder %s83, %s84
    %p93 = scmp.eq.s32.totalorder %s17, 0
    %p94 = por %p92, %p93
    %p95 = scmp.ne.s32.totalorder %s83, %s84
    %p96 = scmp.eq.s32.totalorder %s18, 1
    %p97 = por %p95, %p96
    %p99 = scmp.ne.s32.totalorder %s84, %s98
    %p100 = scmp.eq.s32.totalorder %s18, 0
    %p101 = por %p99, %p100
    %s103 = sadd.s32 %s102, 1
    %p106 = scmp.eq.s32.totalorder %s12, 1
    %p107 = scmp.ne.s32.totalorder %s102, %s104
    %p108 = scmp.eq.s32.totalorder %s12, 0
    %p109 = por %p107, %p108
    %p110 = scmp.ne.s32.totalorder %s102, %s104
    %p111 = scmp.eq.s32.totalorder %s17, 1
    %p112 = por %p110, %p111
    %p113 = scmp.ne.s32.totalorder %s104, %s105
    %p114 = scmp.eq.s32.totalorder %s17, 0
    %p115 = por %p113, %p114
    %p116 = scmp.ne.s32.totalorder %s104, %s105
    %p117 = scmp.eq.s32.totalorder %s18, 1
    %p118 = por %p116, %p117
    %p120 = scmp.ne.s32.totalorder %s105, %s119
    %p121 = scmp.eq.s32.totalorder %s18, 0
    %p122 = por %p120, %p121
    %s124 = sadd.s32 %s123, 1
    %p127 = scmp.eq.s32.totalorder %s12, 1
    %p128 = scmp.ne.s32.totalorder %s123, %s125
    %p129 = scmp.eq.s32.totalorder %s12, 0
    %p130 = por %p128, %p129
    %p131 = scmp.ne.s32.totalorder %s123, %s125
    %p132 = scmp.eq.s32.totalorder %s17, 1
    %p133 = por %p131, %p132
    %p134 = scmp.ne.s32.totalorder %s125, %s126
    %p135 = scmp.eq.s32.totalorder %s17, 0
    %p136 = por %p134, %p135
    %p137 = scmp.ne.s32.totalorder %s125, %s126
    %p138 = scmp.eq.s32.totalorder %s18, 1
    %p139 = por %p137, %p138
    %p141 = scmp.ne.s32.totalorder %s126, %s140
    %p142 = scmp.eq.s32.totalorder %s18, 0
    %p143 = por %p141, %p142
    %s144 = ssub.s32 %s19, %s31
    %s145 = ssub.s32 %s20, %s27
    %s146 = sor.u32 %s144, %s145
    %p147 = scmp.eq.s32.totalorder %s146, 0
    %s149 = sadd.s32 %s148, 1
    %s150 = scalar_select %p147, %s148, %s149
    %p153 = pneg %p147
    %p154 = scmp.eq.s32.totalorder %s12, 1
    %p155 = por %p153, %p154
    %p156 = scmp.ne.s32.totalorder %s148, %s151
    %p157 = scmp.eq.s32.totalorder %s12, 0
    %p158 = por %p156, %p157
    %p159 = scmp.ne.s32.totalorder %s148, %s151
    %p160 = scmp.eq.s32.totalorder %s17, 1
    %p161 = por %p159, %p160
    %p162 = scmp.ne.s32.totalorder %s151, %s152
    %p163 = scmp.eq.s32.totalorder %s17, 0
    %p164 = por %p162, %p163
    %p165 = scmp.ne.s32.totalorder %s151, %s152
    %p166 = scmp.eq.s32.totalorder %s18, 1
    %p167 = por %p165, %p166
    %p169 = scmp.ne.s32.totalorder %s152, %s168
    %p170 = scmp.eq.s32.totalorder %s18, 0
    %p171 = por %p169, %p170
    %p172 = scmp.le.s32.totalorder 1, %s12
    %p173 = scmp.lt.s32.totalorder %s12, 3
    %p174 = pnand %p172, %p173
    %p175 = pneg %p174
    // Predicated region
    $region9: #{guide_pointwise_nn.1} parent=5 // pred_check
      _
    $region10: #{guide_pointwise_nn.1} parent=5 // pred_check_branch
      %177 = sbr.rel (%p174) target = $region12
    $region11: #{guide_pointwise_nn.1} parent=5 // pred_region
      %s178 = ssub.s32 %s12, 1
      // Predicated region
      $region13: #{guide_pointwise_nn.1} parent=11 // pred_check
        %p179 = pneg %p73
      $region14: #{guide_pointwise_nn.1} parent=11 // pred_check_branch
        %181 = sbr.rel (%p179) target = $region16
      $region15: #{guide_pointwise_nn.1} parent=11 // pred_region
        _
      $region16: #{guide_pointwise_nn.1} parent=11 // pred_fallthru
        _
      // Predicated region
      $region17: #{guide_pointwise_nn.1} parent=11 // pred_check
        %p182 = pneg %p94
      $region18: #{guide_pointwise_nn.1} parent=11 // pred_check_branch
        %184 = sbr.rel (%p182) target = $region20
      $region19: #{guide_pointwise_nn.1} parent=11 // pred_region
        _
      $region20: #{guide_pointwise_nn.1} parent=11 // pred_fallthru
        _
      // Predicated region
      $region21: #{guide_pointwise_nn.1} parent=11 // pred_check
        %p185 = pneg %p115
      $region22: #{guide_pointwise_nn.1} parent=11 // pred_check_branch
        %187 = sbr.rel (%p185) target = $region24
      $region23: #{guide_pointwise_nn.1} parent=11 // pred_region
        _
      $region24: #{guide_pointwise_nn.1} parent=11 // pred_fallthru
        _
      // Predicated region
      $region25: #{guide_pointwise_nn.1} parent=11 // pred_check
        %p188 = pneg %p136
      $region26: #{guide_pointwise_nn.1} parent=11 // pred_check_branch
        %190 = sbr.rel (%p188) target = $region28
      $region27: #{guide_pointwise_nn.1} parent=11 // pred_region
        _
      $region28: #{guide_pointwise_nn.1} parent=11 // pred_fallthru
        _
    $region12: #{guide_pointwise_nn.1} parent=5 // pred_fallthru
      _
    %p191 = scmp.lt.s32.totalorder %s12, 2
    // Predicated region
    $region29: #{guide_pointwise_nn.1} parent=5 // pred_check
      %p192 = pneg %p191
    $region30: #{guide_pointwise_nn.1} parent=5 // pred_check_branch
      %194 = sbr.rel (%p192) target = $region32
    $region31: #{guide_pointwise_nn.1} parent=5 // pred_region
      // Predicated region
      $region33: #{guide_pointwise_nn.1} parent=31 // pred_check
        %p195 = pneg %p46
      $region34: #{guide_pointwise_nn.1} parent=31 // pred_check_branch
        %197 = sbr.rel (%p195) target = $region36
      $region35: #{guide_pointwise_nn.1} parent=31 // pred_region
        %s198 = smul.u32 2, %s20
        %p199 = scmp.lt.s32.totalorder %s19, 1
        %s200 = scalar_select %p199, %s19, 1
        %p201 = scmp.lt.s32.totalorder %s198, 1
        %s202 = scalar_select %p201, %s198, 1
        %s203 = smul.addr %s200, 2
        %s204 = sadd.s32 %s202, %s203
        %s205 = smul.addr %s204, 4
        %s206 = scalar_lea.vmem %s0, %s205
        %s207 = smul.u32 2, %s20
      $region36: #{guide_pointwise_nn.1} parent=31 // pred_fallthru
        _
    $region32: #{guide_pointwise_nn.1} parent=5 // pred_fallthru
      _
    %p208 = scmp.le.s32.totalorder 1, %s12
    %p209 = scmp.lt.s32.totalorder %s12, 3
    %p210 = pnand %p208, %p209
    %p211 = pneg %p210
    // Predicated region
    $region37: #{guide_pointwise_nn.1} parent=5 // pred_check
      _
    $region38: #{guide_pointwise_nn.1} parent=5 // pred_check_branch
      %213 = sbr.rel (%p210) target = $region40
    $region39: #{guide_pointwise_nn.1} parent=5 // pred_region
      %s214 = ssub.s32 %s12, 1
      %s215 = smul.u32 2, %s22
      %p216 = scmp.lt.s32.totalorder %s21, 1
      %s217 = scalar_select %p216, %s21, 1
      %p218 = scmp.lt.s32.totalorder %s215, 1
      %s219 = scalar_select %p218, %s215, 1
      %s220 = smul.addr %s217, 2
      %s221 = sadd.s32 %s219, %s220
      %s222 = smul.addr %s221, 4
      %s223 = scalar_lea.vmem %s0, %s222
      %p224 = pneg %p52
      %p225 = pneg %p49
      %p226 = pneg %p73
      %p227 = pneg %p70
      %p228 = pneg %p94
      %p229 = pneg %p91
      %p230 = pneg %p115
      %p231 = pneg %p112
      %p232 = pneg %p136
      %p233 = pneg %p133
      %p234 = pneg %p164
      %p235 = pneg %p161
      %s236 = smul.u32 2, %s22
      %p237 = scmp.lt.s32.totalorder %s21, 1
      %s238 = scalar_select %p237, %s21, 1
      %p239 = scmp.lt.s32.totalorder %s236, 1
      %s240 = scalar_select %p239, %s236, 1
      %s241 = smul.addr %s238, 2
      %s242 = sadd.s32 %s240, %s241
      %s243 = scalar_lea.vmem %s5, %s242
      %s244 = smul.u32 2, %s22
      %p245 = scmp.lt.s32.totalorder %s21, 1
      %s246 = scalar_select %p245, %s21, 1
      %p247 = scmp.lt.s32.totalorder %s244, 1
      %s248 = scalar_select %p247, %s244, 1
      %s249 = smul.addr %s246, 2
      %s250 = sadd.s32 %s248, %s249
      %s251 = smul.addr %s250, 4
      %s252 = scalar_lea.vmem %s0, %s251
      %s253 = smul.u32 2, %s22
      %s254 = smul.u32 2, %s22
      %p255 = scmp.lt.s32.totalorder %s21, 1
      %s256 = scalar_select %p255, %s21, 1
      %p257 = scmp.lt.s32.totalorder %s254, 1
      %s258 = scalar_select %p257, %s254, 1
      %s259 = smul.addr %s256, 2
      %s260 = sadd.s32 %s258, %s259
      %s261 = scalar_lea.vmem %s5, %s260
      %s262 = smul.u32 2, %s22
      %v263 = vld [vmem:[%s1] sm:$0xff]
      %v264 = vld [vmem:[%s1 + $0x8] sm:$0xff]
      %v265 = vld [vmem:[%s2] sm:$0xff]
      %v266 = vld [vmem:[%s2 + $0x8] sm:$0xff]
      %268 = vset.pattern.permute.xlu0 0
      %269 = vperm.xlu0 %268, %v265
      %v270 = vpop.permute.xlu0 %269
      %273 = vset.pattern.permute.xlu0 0
      %274 = vperm.xlu0 %273, %v266
      %v275 = vpop.permute.xlu0 %274
      %v277 = vld [vmem:[%s3] sm:$0xff]
      %v278 = vld [vmem:[%s3 + $0x8] sm:$0xff]
      %280 = vset.pattern.permute.xlu0 0
      %281 = vperm.xlu0 %280, %v277
      %v282 = vpop.permute.xlu0 %281
      %285 = vset.pattern.permute.xlu0 0
      %286 = vperm.xlu0 %285, %v278
      %v287 = vpop.permute.xlu0 %286
      %s289 = sld [smem:[#allocation2]]
      %v290 = vstv %s289
      %v291 = vld [vmem:[%s252] sm:$0x77]
      %v293 = vcombine.high %v291, %v291
      %vm294 = vcmask 23552
      %v296 = vsel %vm294, %v263, 0
      %v299 = vsel %vm294, %v264, 0
      %vm301 = vcmask 1042432
      %v302 = vsel %vm301, %v291, 0
      %v304 = vsel %vm301, %v293, 0
      %306 = vmatprep.subr.mxu0 0.0
      %307 = vmatpush1.msra.mxu0 0.0
      %308 = vmatprep.subr.mxu0 0.0
      %309 = vmatpush1.msra.mxu0 0.0
      %310 = vmatprep.subr.mxu0 0.0
      %311 = vmatpush1.msra.mxu0 0.0
      %312 = vmatprep.subr.mxu0 0.0
      %313 = vmatpush1.msra.mxu0 0.0
      %314 = vmatprep.subr.mxu0 0.0
      %315 = vmatpush1.msra.mxu0 0.0
      %316 = vmatprep.subr.mxu0 0.0
      %317 = vmatpush1.msra.mxu0 0.0
      %318 = vmatprep.subr.mxu0 0.0
      %319 = vmatpush1.msra.mxu0 0.0
      %320 = vmatprep.subr.mxu0 0.0
      %321 = vmatpush1.msra.mxu0 0.0
      %322 = vmatprep.subr.mxu0 0.0
      %323 = vmatpush1.msra.mxu0 0.0
      %324 = vmatprep.subr.mxu0 0.0
      %325 = vmatpush1.msra.mxu0 0.0
      %326 = vmatprep.subr.mxu0 0.0
      %327 = vmatpush1.msra.mxu0 0.0
      %328 = vmatprep.subr.mxu0 0.0
      %329 = vmatpush1.msra.mxu0 0.0
      %330 = vmatprep.subr.mxu0 0.0
      %331 = vmatpush1.msra.mxu0 0.0
      %332 = vmatprep.subr.mxu0 0.0
      %333 = vmatpush1.msra.mxu0 0.0
      %334 = vmatprep.subr.mxu0 0.0
      %335 = vmatpush1.msra.mxu0 0.0
      %336 = vmatprep.subr.mxu0 %v304
      %337 = vmatpush1.msra.mxu0 %v302
      %338 = vmatprep.subr.mxu0 0.0
      %339 = vmatpush2.msra.mxu0 0.0
      %340 = vmatprep.subr.mxu0 0.0
      %341 = vmatpush2.msra.mxu0 0.0
      %342 = vmatprep.subr.mxu0 0.0
      %343 = vmatpush2.msra.mxu0 0.0
      %344 = vmatprep.subr.mxu0 0.0
      %345 = vmatpush2.msra.mxu0 0.0
      %346 = vmatprep.subr.mxu0 0.0
      %347 = vmatpush2.msra.mxu0 0.0
      %348 = vmatprep.subr.mxu0 0.0
      %349 = vmatpush2.msra.mxu0 0.0
      %350 = vmatprep.subr.mxu0 0.0
      %351 = vmatpush2.msra.mxu0 0.0
      %352 = vmatprep.subr.mxu0 0.0
      %353 = vmatpush2.msra.mxu0 0.0
      %354 = vmatprep.subr.mxu0 0.0
      %355 = vmatpush2.msra.mxu0 0.0
      %356 = vmatprep.subr.mxu0 0.0
      %357 = vmatpush2.msra.mxu0 0.0
      %358 = vmatprep.subr.mxu0 0.0
      %359 = vmatpush2.msra.mxu0 0.0
      %360 = vmatprep.subr.mxu0 0.0
      %361 = vmatpush2.msra.mxu0 0.0
      %362 = vmatprep.subr.mxu0 0.0
      %363 = vmatpush2.msra.mxu0 0.0
      %364 = vmatprep.subr.mxu0 0.0
      %365 = vmatpush2.msra.mxu0 0.0
      %366 = vmatprep.subr.mxu0 0.0
      %367 = vmatpush2.msra.mxu0 0.0
      %368 = vmatprep.subr.mxu0 0.0
      %369 = vmatpush2.msra.mxu0 0.0
      %370 = vmatprep.mubr.f32.mxu0 0.0
      %371 = vmatmul.mubr.f32.gmra.mxu0 %v296
      %v372 = vpop.f32.mrf.mxu0
      %v373 = vadd.f32 %v270, %v372
      %v374 = vpop.f32.mrf.mxu0
      %v375 = vadd.f32 %v270, %v374
      %376 = vmatprep.mubr.f32.mxu0 0.0
      %377 = vmatmul.mubr.f32.gmra.mxu0 %v299
      %v378 = vpop.f32.mrf.mxu0
      %v379 = vadd.f32 %v275, %v378
      %v380 = vpop.f32.mrf.mxu0
      %v381 = vadd.f32 %v275, %v380
      %382 = vdwg.mxu0
      %v383 = vmax.f32 %v373, 0.0
      %v384 = vmax.f32 %v375, 0.0
      %v385 = vmax.f32 %v379, 0.0
      %v386 = vmax.f32 %v381, 0.0
      %v387 = vmul.f32 %v383, %v282
      %v388 = vmul.f32 %v384, %v282
      %v389 = vmul.f32 %v385, %v287
      %v390 = vmul.f32 %v386, %v287
      %v391 = vadd.f32 %v387, %v389
      %v392 = vrot.slane %v391, 4
      %v393 = vadd.f32 %v391, %v392
      %v394 = vrot.slane %v393, 2
      %v395 = vadd.f32 %v393, %v394
      %v396 = vrot.slane %v395, 1
      %v397 = vadd.f32 %v395, %v396
      %v398 = vadd.f32 %v388, %v390
      %v399 = vrot.slane %v398, 4
      %v400 = vadd.f32 %v398, %v399
      %v401 = vrot.slane %v400, 2
      %v402 = vadd.f32 %v400, %v401
      %v403 = vrot.slane %v402, 1
      %v404 = vadd.f32 %v402, %v403
      %v405 = vadd.f32 %v397, %v290
      %v406 = vadd.f32 %v404, %v290
      %v407 = vxor.u32 %v405, 2147483648
      %v408 = vxor.u32 %v406, 2147483648
      %v409 = vmul.f32 %v407, 1.442695
      %v410 = vpow.pop %v409
      %v411 = vmul.f32 %v408, 1.442695
      %v412 = vpow.pop %v411
      %v413 = vadd.f32 %v410, 1.0
      %v414 = vadd.f32 %v412, 1.0
      %v415 = vrcp.pop %v413
      %v416 = vmul.f32 1.0, %v415
      %v417 = vrcp.pop %v414
      %v418 = vmul.f32 1.0, %v417
      %v421 = vcombine.low %v416, %v418
      %v423 = vunpack.c.l.s4 1966171168
      %v424 = vunpack.c.0.s8 %v423
      %v425 = vlaneseq
      %v426 = vshrl.u32 %v425, 7
      %v427 = vsub.s32 %v424, %v426
      %v428 = vrot.slane %v421, %v427
      %v430 = vunpack.c.l.s4 1966171168
      %v431 = vunpack.c.0.s8 %v430
      %v432 = vlaneseq
      %v433 = vshrl.u32 %v432, 7
      %v434 = vsub.s32 %v431, %v433
      %v435 = vrot.slane %v428, %v434
      %v437 = vlaneseq
      %vm438 = vcmp.ge.s32.totalorder %v437, 0
      %vm439 = vcmp.lt.s32.totalorder %v437, 256
      %vm440 = vmand %vm438, %vm439
      %441 = vst.msk [vmem:[%s261] sm:$0x3] %vm440, %v435
      %s442 = smul.u32 2, %s22
      %p443 = scmp.lt.s32.totalorder %s21, 1
      %s444 = scalar_select %p443, %s21, 1
      %p445 = scmp.lt.s32.totalorder %s442, 1
      %s446 = scalar_select %p445, %s442, 1
      %s447 = smul.addr %s444, 2
      %s448 = sadd.s32 %s446, %s447
      %s449 = scalar_lea.vmem %s5, %s448
      // Predicated region
      $region41: #{guide_pointwise_nn.1} parent=39 // pred_check
        %p450 = pneg %p161
      $region42: #{guide_pointwise_nn.1} parent=39 // pred_check_branch
        %452 = sbr.rel (%p450) target = $region44
      $region43: #{guide_pointwise_nn.1} parent=39 // pred_region
        %s453 = smul.u32 2, %s22
      $region44: #{guide_pointwise_nn.1} parent=39 // pred_fallthru
        _
    $region40: #{guide_pointwise_nn.1} parent=5 // pred_fallthru
      _
    %p454 = scmp.le.s32.totalorder 2, %s12
    // Predicated region
    $region45: #{guide_pointwise_nn.1} parent=5 // pred_check
      %p455 = pneg %p454
    $region46: #{guide_pointwise_nn.1} parent=5 // pred_check_branch
      %457 = sbr.rel (%p455) target = $region48
    $region47: #{guide_pointwise_nn.1} parent=5 // pred_region
      %s458 = ssub.s32 %s12, 2
      // Predicated region
      $region49: #{guide_pointwise_nn.1} parent=47 // pred_check
        %p459 = pneg %p167
      $region50: #{guide_pointwise_nn.1} parent=47 // pred_check_branch
        %461 = sbr.rel (%p459) target = $region52
      $region51: #{guide_pointwise_nn.1} parent=47 // pred_region
        %s462 = smul.u32 2, %s24
        %p463 = scmp.lt.s32.totalorder %s23, 1
        %s464 = scalar_select %p463, %s23, 1
        %p465 = scmp.lt.s32.totalorder %s462, 1
        %s466 = scalar_select %p465, %s462, 1
        %s467 = smul.addr %s464, 2
        %s468 = sadd.s32 %s466, %s467
        %s469 = scalar_lea.vmem %s5, %s468
      $region52: #{guide_pointwise_nn.1} parent=47 // pred_fallthru
        _
    $region48: #{guide_pointwise_nn.1} parent=5 // pred_fallthru
      _
  $region6: #{guide_pointwise_nn.1} parent=0 // loop_footer
    %s16 = sadd.s32 1, %s12
  $region7: #{guide_pointwise_nn.1} parent=0 // loop_footer_branch
    %11 = sbr.rel target = $region3
  $region8: #{guide_pointwise_nn.1} parent=0 // loop_exit
    _

</llo_original>
